<compile_context>
chip_gen: v6e
topology: v6e:2x2x1
jax: 0.10.0
libtpu: 0.0.40
codegen_flags: <defaults>
</compile_context>

<pallas_src>
import jax
import jax.numpy as jnp
from jax import lax
from jax.experimental import pallas as pl
from jax.experimental.pallas import tpu as pltpu


def _round_up(x: int, m: int) -> int:
    return ((x + m - 1) // m) * m


def featnet_kernel(deps_ref, seg_ref, row_ref, w_ref, b_ref, out_ref, acc_ref):
    """Grid = (L,). One embedding row (selected via scalar-prefetched deps) per step.

    deps_ref, seg_ref : SMEM int32 [L]   (scalar-prefetch; deps only used by index_map)
    row_ref           : VMEM [1, 1, Hp]  (embedding row deps[l], gathered by BlockSpec)
    w_ref             : VMEM [Hp, Hp]    (fc1 weight, NOT transposed)
    b_ref             : VMEM [1, Hp]     (fc1 bias)
    out_ref           : VMEM [Bp, Hp]    (final result, written on the last step)
    acc_ref           : VMEM [Bp, Hp] f32 scratch (per-bag running sums)
    """
    del deps_ref  # consumed by the index_map only
    l = pl.program_id(0)
    num_l = pl.num_programs(0)
    bp = acc_ref.shape[0]

    @pl.when(l == 0)
    def _init():
        acc_ref[...] = jnp.zeros_like(acc_ref)

    # EmbeddingBag(mode='sum'): add this token's embedding row into its bag's row.
    s = seg_ref[l]                                                  # scalar bag id
    sel = (lax.broadcasted_iota(jnp.int32, (bp, 1), 0) == s).astype(jnp.float32)
    acc_ref[...] += sel * row_ref[0].astype(jnp.float32)            # (Bp,1)*(1,Hp)

    @pl.when(l == num_l - 1)
    def _finalize():
        bags = acc_ref[...]
        # F.leaky_relu (default negative_slope = 0.01)
        x = jnp.maximum(bags, 0.01 * bags)
        # TODO(synk): nn.Dropout is stochastic in train mode; implemented here as the
        # inference-mode identity (exact deterministic equivalent of eval()).
        # fc1: y = x @ W^T + b  (contract on dim 1 of both operands; no host transpose)
        y = lax.dot_general(x, w_ref[...],
                            dimension_numbers=(((1,), (1,)), ((), ())),
                            preferred_element_type=jnp.float32)
        out_ref[...] = (y + b_ref[...]).astype(out_ref.dtype)


def featnet_forward(deps, deps_offsets, emb_w, fc1_w, fc1_b):
    """deps: int32 [L]; deps_offsets: int32 [B] (bag start offsets, offsets[0] == 0)."""
    L = int(deps.shape[0])
    B = int(deps_offsets.shape[0])
    V, H = emb_w.shape
    Hp = _round_up(H, 128)     # lane-dense feature axis
    Bp = _round_up(B, 8)       # sublane-aligned bag axis

    # Map each dep position to its bag (PyTorch EmbeddingBag offsets semantics).
    positions = jnp.arange(L, dtype=jnp.int32)
    seg_ids = (jnp.searchsorted(deps_offsets.astype(jnp.int32), positions,
                                side="right") - 1).astype(jnp.int32)
    deps_i32 = deps.astype(jnp.int32)

    # Zero-pad params to lane-dense shapes.  The embedding table is reshaped to
    # [V, 1, Hp] so the gathered block (1, 1, Hp) trivially satisfies the (8, 128)
    # tiling rule on its last two dims; only the leading (row) index is data-dependent.
    emb_p = jnp.pad(emb_w, ((0, 0), (0, Hp - H))).reshape(V, 1, Hp)
    w_p = jnp.pad(fc1_w, ((0, Hp - H), (0, Hp - H)))
    b_p = jnp.pad(fc1_b, (0, Hp - H)).reshape(1, Hp)

    grid_spec = pltpu.PrefetchScalarGridSpec(
        num_scalar_prefetch=2,            # deps, seg_ids -> SMEM, feed the index_maps
        grid=(L,),
        in_specs=[
            # Gather: embedding row deps[l], one row per grid step (auto double-buffered).
            pl.BlockSpec((1, 1, Hp), lambda l, deps, seg: (deps[l], 0, 0)),
            # fc1 weight / bias: resident (constant block index across the grid).
            pl.BlockSpec((Hp, Hp), lambda l, deps, seg: (0, 0)),
            pl.BlockSpec((1, Hp), lambda l, deps, seg: (0, 0)),
        ],
        out_specs=pl.BlockSpec((Bp, Hp), lambda l, deps, seg: (0, 0)),
        scratch_shapes=[pltpu.VMEM((Bp, Hp), jnp.float32)],
    )

    out_p = pl.pallas_call(
        featnet_kernel,
        out_shape=jax.ShapeDtypeStruct((Bp, Hp), jnp.float32),
        grid_spec=grid_spec,
        compiler_params=pltpu.CompilerParams(
            dimension_semantics=("arbitrary",),       # L axis is a reduction
            vmem_limit_bytes=32 * 1024 * 1024,        # fits v5e/v6e/v7x budgets
        ),
    )(deps_i32, seg_ids, emb_p, w_p, b_p)

    return out_p[:B, :H]


def featnet_reference(deps, deps_offsets, emb_w, fc1_w, fc1_b):
    """Pure-JAX reference mirroring the PyTorch forward (eval mode)."""
    L = deps.shape[0]
    B = deps_offsets.shape[0]
    positions = jnp.arange(L, dtype=jnp.int32)
    seg_ids = jnp.searchsorted(deps_offsets.astype(jnp.int32), positions,
                               side="right") - 1
    gathered = emb_w[deps]                                          # [L, H]
    bags = jax.ops.segment_sum(gathered, seg_ids, num_segments=B)   # [B, H]
    x = jnp.where(bags > 0, bags, 0.01 * bags)
    return x @ fc1_w.T + fc1_b


if __name__ == "__main__":
    # Small deterministic configuration.
    num_dep_words = 64   # vocabulary size V
    hidden_dim = 32      # H
    num_bags = 8         # B
    total_deps = 16      # L
    dropout_p = 0.1      # unused (inference-mode dropout == identity)

    key = jax.random.PRNGKey(0)
    k_emb, k_w, k_b, k_deps = jax.random.split(key, 4)

    emb_w = jax.random.normal(k_emb, (num_dep_words, hidden_dim), jnp.float32)
    fc1_w = jax.random.normal(k_w, (hidden_dim, hidden_dim), jnp.float32) * 0.1
    fc1_b = jax.random.normal(k_b, (hidden_dim,), jnp.float32) * 0.01

    deps = jax.random.randint(k_deps, (total_deps,), 0, num_dep_words, jnp.int32)
    # Bag start offsets (non-decreasing, starts at 0; bag 2 intentionally empty).
    deps_offsets = jnp.array([0, 2, 4, 4, 7, 10, 12, 15], dtype=jnp.int32)
    assert deps_offsets.shape[0] == num_bags

    out = featnet_forward(deps, deps_offsets, emb_w, fc1_w, fc1_b)
    out = jax.block_until_ready(out)

    ref = featnet_reference(deps, deps_offsets, emb_w, fc1_w, fc1_b)
    assert out.shape == (num_bags, hidden_dim)
    assert jnp.allclose(out, ref, atol=1e-4, rtol=1e-4), "mismatch vs reference"

    print("KERNEL_OK")
</pallas_src>

<mosaic_0001>
module attributes {stable_mosaic.version = 11 : i64} {
  func.func @featnet_kernel(%arg0: i32, %arg1: memref<16xi32, #tpu.memory_space<smem>>, %arg2: memref<16xi32, #tpu.memory_space<smem>>, %arg3: memref<1x1x128xf32, #tpu.memory_space<vmem>>, %arg4: memref<128x128xf32, #tpu.memory_space<vmem>>, %arg5: memref<1x128xf32, #tpu.memory_space<vmem>>, %arg6: memref<8x128xf32, #tpu.memory_space<vmem>>, %arg7: memref<8x128xf32, #tpu.memory_space<vmem>>) attributes {dimension_semantics = [#tpu.dimension_semantics<arbitrary>], iteration_bounds = array<i64: 16>, scalar_prefetch = 2 : i64, scratch_operands = 1 : i64, tpu.core_type = #tpu.core_type<tc>, window_params = [{transform_indices = @transform_0, window_bounds = array<i64: 1, 1, 128>}, {pipeline_mode = #tpu.pipeline_mode<synchronous>, transform_indices = @transform_1, window_bounds = array<i64: 128, 128>}, {pipeline_mode = #tpu.pipeline_mode<synchronous>, transform_indices = @transform_2, window_bounds = array<i64: 1, 128>}, {pipeline_mode = #tpu.pipeline_mode<synchronous>, transform_indices = @transform_3, window_bounds = array<i64: 8, 128>}]} {
    %c0_i32 = arith.constant 0 : i32
    %0 = arith.cmpi eq, %arg0, %c0_i32 : i32
    %1 = arith.extui %0 : i1 to i32
    %c0_i32_0 = arith.constant 0 : i32
    %2 = arith.cmpi ne, %1, %c0_i32_0 : i32
    scf.if %2 {
      %cst = arith.constant 0.000000e+00 : f32
      %21 = vector.broadcast %cst : f32 to vector<8x128xf32>
      %c0_8 = arith.constant 0 : index
      %c0_9 = arith.constant 0 : index
      %22 = vector.load %arg7[%c0_8, %c0_9] : memref<8x128xf32, #tpu.memory_space<vmem>>, vector<8x128xf32>
      tpu.vector_store %arg7[%c0_8, %c0_9], %21 {strides = array<i32>} : memref<8x128xf32, #tpu.memory_space<vmem>>, vector<8x128xf32>,
    } else {
    }
    %3 = arith.index_cast %arg0 : i32 to index
    %4 = memref.load %arg2[%3] : memref<16xi32, #tpu.memory_space<smem>>
    %5 = tpu.iota {dimensions = array<i32: 0>} : vector<8x1xi32>
    %6 = vector.broadcast %4 : i32 to vector<8x1xi32>
    %7 = arith.cmpi eq, %5, %6 : vector<8x1xi32>
    %8 = arith.extui %7 : vector<8x1xi1> to vector<8x1xi32>
    %9 = arith.sitofp %8 : vector<8x1xi32> to vector<8x1xf32>
    %c0 = arith.constant 0 : index
    %c0_1 = arith.constant 0 : index
    %10 = vector.load %arg7[%c0, %c0_1] : memref<8x128xf32, #tpu.memory_space<vmem>>, vector<8x128xf32>
    %c0_2 = arith.constant 0 : index
    %c0_3 = arith.constant 0 : index
    %c0_4 = arith.constant 0 : index
    %11 = vector.load %arg3[%c0_2, %c0_3, %c0_4] : memref<1x1x128xf32, #tpu.memory_space<vmem>>, vector<1x1x128xf32>
    %12 = vector.shape_cast %11 : vector<1x1x128xf32> to vector<1x128xf32>
    %13 = vector.broadcast %9 : vector<8x1xf32> to vector<8x128xf32>
    %14 = vector.broadcast %12 : vector<1x128xf32> to vector<8x128xf32>
    %15 = arith.mulf %13, %14 : vector<8x128xf32>
    %16 = arith.addf %10, %15 : vector<8x128xf32>
    %c0_5 = arith.constant 0 : index
    %c0_6 = arith.constant 0 : index
    %17 = vector.load %arg7[%c0_5, %c0_6] : memref<8x128xf32, #tpu.memory_space<vmem>>, vector<8x128xf32>
    tpu.vector_store %arg7[%c0_5, %c0_6], %16 {strides = array<i32>} : memref<8x128xf32, #tpu.memory_space<vmem>>, vector<8x128xf32>,
    %c15_i32 = arith.constant 15 : i32
    %18 = arith.cmpi eq, %arg0, %c15_i32 : i32
    %19 = arith.extui %18 : i1 to i32
    %c0_i32_7 = arith.constant 0 : i32
    %20 = arith.cmpi ne, %19, %c0_i32_7 : i32
    scf.if %20 {
      %c0_8 = arith.constant 0 : index
      %c0_9 = arith.constant 0 : index
      %21 = vector.load %arg7[%c0_8, %c0_9] : memref<8x128xf32, #tpu.memory_space<vmem>>, vector<8x128xf32>
      %cst = arith.constant 0.00999999977 : f32
      %22 = vector.broadcast %cst : f32 to vector<8x128xf32>
      %23 = arith.mulf %22, %21 : vector<8x128xf32>
      %24 = arith.maximumf %21, %23 : vector<8x128xf32>
      %c0_10 = arith.constant 0 : index
      %c0_11 = arith.constant 0 : index
      %25 = vector.load %arg4[%c0_10, %c0_11] : memref<128x128xf32, #tpu.memory_space<vmem>>, vector<128x128xf32>
      %cst_12 = arith.constant dense<0.000000e+00> : vector<8x128xf32>
      %26 = tpu.matmul %24, %25, %cst_12 {dimension_numbers = #tpu.dot_dimension_numbers<[1], [1], [0], [0], [0, 0, 1, 0], [], []>} : vector<8x128xf32>, vector<128x128xf32>, vector<8x128xf32> -> vector<8x128xf32>
      %c0_13 = arith.constant 0 : index
      %c0_14 = arith.constant 0 : index
      %27 = vector.load %arg5[%c0_13, %c0_14] : memref<1x128xf32, #tpu.memory_space<vmem>>, vector<1x128xf32>
      %28 = vector.broadcast %27 : vector<1x128xf32> to vector<8x128xf32>
      %29 = arith.addf %26, %28 : vector<8x128xf32>
      %c0_15 = arith.constant 0 : index
      %c0_16 = arith.constant 0 : index
      %30 = vector.load %arg6[%c0_15, %c0_16] : memref<8x128xf32, #tpu.memory_space<vmem>>, vector<8x128xf32>
      tpu.vector_store %arg6[%c0_15, %c0_16], %29 {strides = array<i32>} : memref<8x128xf32, #tpu.memory_space<vmem>>, vector<8x128xf32>,
    } else {
    }
    return
  }
  func.func @transform_0(%arg0: i32, %arg1: memref<16xi32, #tpu.memory_space<smem>>, %arg2: memref<16xi32, #tpu.memory_space<smem>>) -> (i32, i32, i32) {
    %0 = arith.index_cast %arg0 : i32 to index
    %1 = memref.load %arg1[%0] : memref<16xi32, #tpu.memory_space<smem>>
    %c0_i32 = arith.constant 0 : i32
    %c0_i32_0 = arith.constant 0 : i32
    %c0_i32_1 = arith.constant 0 : i32
    return %1, %c0_i32, %c0_i32_0 : i32, i32, i32
  }
  func.func @transform_1(%arg0: i32, %arg1: memref<16xi32, #tpu.memory_space<smem>>, %arg2: memref<16xi32, #tpu.memory_space<smem>>) -> (i32, i32) {
    %c0_i32 = arith.constant 0 : i32
    %c0_i32_0 = arith.constant 0 : i32
    %c0_i32_1 = arith.constant 0 : i32
    return %c0_i32, %c0_i32_0 : i32, i32
  }
  func.func @transform_2(%arg0: i32, %arg1: memref<16xi32, #tpu.memory_space<smem>>, %arg2: memref<16xi32, #tpu.memory_space<smem>>) -> (i32, i32) {
    %c0_i32 = arith.constant 0 : i32
    %c0_i32_0 = arith.constant 0 : i32
    %c0_i32_1 = arith.constant 0 : i32
    return %c0_i32, %c0_i32_0 : i32, i32
  }
  func.func @transform_3(%arg0: i32, %arg1: memref<16xi32, #tpu.memory_space<smem>>, %arg2: memref<16xi32, #tpu.memory_space<smem>>) -> (i32, i32) {
    %c0_i32 = arith.constant 0 : i32
    %c0_i32_0 = arith.constant 0 : i32
    %c0_i32_1 = arith.constant 0 : i32
    return %c0_i32, %c0_i32_0 : i32, i32
  }
}

</mosaic_0001>

<llo_original>
// kernel: tpu_custom_call.1
$region0: #{tpu_custom_call.1}
  #allocation0 [shape = 'u32[]', space=smem, size = 0x4, offset = 0x4, fixed_abs, tag = 'smem constant byte address 0x4 - core index']
  #allocation1 [shape = 'u32[144,128]{1,0:T(1,128)}', space=vmem, size = 0x12000, scoped, tag = 'internal scratch']
  #allocation2 [shape = 'f32[8,128]{1,0:T(8,128)}', space=vmem, size = 0x1000, scoped, tag = 'scratch operand']
  #allocation3 [shape = 's32[1]{0}', space=sflag, size = 0x4, scoped, tag = 'scoped memory for tpu_custom_call.1']
  #allocation4 [shape = 'u8[512]{0}', space=smem, size = 0x200, scoped, tag = 'prefetched SMEM operand 0']
  #allocation5 [shape = 'u8[512]{0}', space=smem, size = 0x200, scoped, tag = 'prefetched SMEM operand 1']
  %s0 = inlined_call_operand.hbm [shape: s32[16], index: 0, kind: input, shape index: {}]
  %s1 = inlined_call_operand.vmem [shape: s32[16], index: 1, kind: input, shape index: {}]
  %s2 = inlined_call_operand.hbm [shape: f32[64,1,128], index: 2, kind: input, shape index: {}]
  %s3 = inlined_call_operand.hbm [shape: f32[128,128], index: 3, kind: input, shape index: {}]
  %s4 = inlined_call_operand.vmem [shape: f32[1,128], index: 4, kind: input, shape index: {}]
  %s5 = inlined_call_operand.hbm [shape: f32[8,128], index: 5, kind: output, shape index: {}]
  %s6 = sld [smem:[#allocation0]]
  $region61: #{tpu_custom_call.1} parent=0
    _
  %s8 = ssub.s32 1, %s6
  %s9 = scalar_select 0, %s8, %s6
  %11 = dma.hbm_to_smem %s0, 16, [#allocation4], [#allocation3]
  %s12 = sshll.u32 %s1, 4
  %s13 = int_to_ptr.vmem [resolvable:$true] %s12
  %15 = dma.vmem_to_smem %s13, 16, [#allocation5], [#allocation3]
  %16 = dma.done [#allocation3], 32
  %17 = sfence
  $region1: #{tpu_custom_call.1} parent=0
    #allocation6 [shape = 'u8[1024]{0}', space=vmem, size = 0x400, scoped, tag = 'input window, operand 2']
    #allocation7 [shape = 's32[2]{0}', space=sflag, size = 0x8, scoped, tag = 'scoped memory for tpu_custom_call.1']
    #allocation8 [shape = 's32[2]{0}', space=sflag, size = 0x8, scoped, tag = 'scoped memory for tpu_custom_call.1']
    #allocation9 [shape = 'u8[65536]{0}', space=vmem, size = 0x10000, scoped, tag = 'input window, operand 3, single buffered']
    #allocation10 [shape = 's32[1]{0}', space=sflag, size = 0x4, scoped, tag = 'scoped memory for tpu_custom_call.1']
    #allocation11 [shape = 'u8[4096]{0}', space=vmem, size = 0x1000, scoped, tag = 'output window, operand 0, single buffered']
    %18 = vsyncpa [#allocation7], 0
    %s19 = scalar_lea.sflag [#allocation7], 1
    %20 = vsyncpa %s19, 0
    %21 = vsyncpa [#allocation10], 0
    %22 = vsyncpa [#allocation8], 0
    loop: start=0, step=1, limit=18
    $region2: #{tpu_custom_call.1} parent=1 // loop_pre_header
      _
    $region3: #{tpu_custom_call.1} parent=1 // loop_header
      %s24 = sphi 0, %s28
      %p25 = scmp.ge.s32.totalorder %s24, 18
      %s36 = sphi 0, %s38
      %s39 = sphi 0, %s36
      %s40 = sphi 0, %s39
      %s56 = sphi 0, %s40
      %s60 = sphi 0, %s60
      %s62 = sphi 0, %s60
      %s63 = sphi 0, %s62
      %s77 = sphi 0, %s63
      %s81 = sphi 0, %s81
      %s83 = sphi 0, %s81
      %s84 = sphi 0, %s83
      %s98 = sphi 0, %s84
      %s102 = sphi 0, %s102
      %s104 = sphi 0, %s102
      %s105 = sphi 0, %s104
      %s119 = sphi 0, %s105
    $region4: #{tpu_custom_call.1} parent=1 // loop_header_branch
      %27 = sbr.rel (%p25) target = $region8
    $region5: #{tpu_custom_call.1} parent=1 // loop_body
      %s29 = ssub.s32 %s24, 1
      %s30 = ssub.s32 %s24, 2
      %s31 = sadd.s32 %s24, 1
      %s32 = sld [smem:[#allocation4 + %s24]]
      %s33 = sld [smem:[#allocation4 + %s31]]
      %s34 = ssub.s32 %s32, %s33
      %p35 = scmp.eq.s32.totalorder %s34, 0
      %s37 = sadd.s32 %s36, 1
      %s38 = scalar_select %p35, %s36, %s37
      %p41 = pneg %p35
      %p42 = scmp.eq.s32.totalorder %s24, 15
      %p43 = por %p41, %p42
      %p44 = scmp.ne.s32.totalorder %s36, %s39
      %p45 = scmp.eq.s32.totalorder %s24, 0
      %p46 = por %p44, %p45
      %p47 = scmp.ne.s32.totalorder %s36, %s39
      %p48 = scmp.eq.s32.totalorder %s29, 15
      %p49 = por %p47, %p48
      %p50 = scmp.ne.s32.totalorder %s39, %s40
      %p51 = scmp.eq.s32.totalorder %s29, 0
      %p52 = por %p50, %p51
      %p53 = scmp.ne.s32.totalorder %s39, %s40
      %p54 = scmp.eq.s32.totalorder %s30, 15
      %p55 = por %p53, %p54
      %p57 = scmp.ne.s32.totalorder %s40, %s56
      %p58 = scmp.eq.s32.totalorder %s30, 0
      %p59 = por %p57, %p58
      %s61 = sadd.s32 %s60, 1
      %p64 = scmp.eq.s32.totalorder %s24, 15
      %p65 = scmp.ne.s32.totalorder %s60, %s62
      %p66 = scmp.eq.s32.totalorder %s24, 0
      %p67 = por %p65, %p66
      %p68 = scmp.ne.s32.totalorder %s60, %s62
      %p69 = scmp.eq.s32.totalorder %s29, 15
      %p70 = por %p68, %p69
      %p71 = scmp.ne.s32.totalorder %s62, %s63
      %p72 = scmp.eq.s32.totalorder %s29, 0
      %p73 = por %p71, %p72
      %p74 = scmp.ne.s32.totalorder %s62, %s63
      %p75 = scmp.eq.s32.totalorder %s30, 15
      %p76 = por %p74, %p75
      %p78 = scmp.ne.s32.totalorder %s63, %s77
      %p79 = scmp.eq.s32.totalorder %s30, 0
      %p80 = por %p78, %p79
      %s82 = sadd.s32 %s81, 1
      %p85 = scmp.eq.s32.totalorder %s24, 15
      %p86 = scmp.ne.s32.totalorder %s81, %s83
      %p87 = scmp.eq.s32.totalorder %s24, 0
      %p88 = por %p86, %p87
      %p89 = scmp.ne.s32.totalorder %s81, %s83
      %p90 = scmp.eq.s32.totalorder %s29, 15
      %p91 = por %p89, %p90
      %p92 = scmp.ne.s32.totalorder %s83, %s84
      %p93 = scmp.eq.s32.totalorder %s29, 0
      %p94 = por %p92, %p93
      %p95 = scmp.ne.s32.totalorder %s83, %s84
      %p96 = scmp.eq.s32.totalorder %s30, 15
      %p97 = por %p95, %p96
      %p99 = scmp.ne.s32.totalorder %s84, %s98
      %p100 = scmp.eq.s32.totalorder %s30, 0
      %p101 = por %p99, %p100
      %s103 = sadd.s32 %s102, 1
      %p106 = scmp.eq.s32.totalorder %s24, 15
      %p107 = scmp.ne.s32.totalorder %s102, %s104
      %p108 = scmp.eq.s32.totalorder %s24, 0
      %p109 = por %p107, %p108
      %p110 = scmp.ne.s32.totalorder %s102, %s104
      %p111 = scmp.eq.s32.totalorder %s29, 15
      %p112 = por %p110, %p111
      %p113 = scmp.ne.s32.totalorder %s104, %s105
      %p114 = scmp.eq.s32.totalorder %s29, 0
      %p115 = por %p113, %p114
      %p116 = scmp.ne.s32.totalorder %s104, %s105
      %p117 = scmp.eq.s32.totalorder %s30, 15
      %p118 = por %p116, %p117
      %p120 = scmp.ne.s32.totalorder %s105, %s119
      %p121 = scmp.eq.s32.totalorder %s30, 0
      %p122 = por %p120, %p121
      %p123 = scmp.le.s32.totalorder 1, %s24
      %p124 = scmp.lt.s32.totalorder %s24, 17
      %p125 = pnand %p123, %p124
      %p126 = pneg %p125
      // Predicated region
      $region9: #{tpu_custom_call.1} parent=5 // pred_check
        _
      $region10: #{tpu_custom_call.1} parent=5 // pred_check_branch
        %128 = sbr.rel (%p125) target = $region12
      $region11: #{tpu_custom_call.1} parent=5 // pred_region
        %s129 = ssub.s32 %s24, 1
        // Predicated region
        $region13: #{tpu_custom_call.1} parent=11 // pred_check
          %p130 = pneg %p73
        $region14: #{tpu_custom_call.1} parent=11 // pred_check_branch
          %132 = sbr.rel (%p130) target = $region16
        $region15: #{tpu_custom_call.1} parent=11 // pred_region
          %s134 = ssub.s32 2048, 2048
          %135 = vsyncadd [#allocation10], %s134
          %s136 = sshll.u32 [#allocation9], 4
          %s137 = int_to_ptr.vmem [resolvable:$true] %s136
          %142 = dma.hbm_to_vmem [thread:$0]  %s3, 2048, %s137, [#allocation10], 128, 128, 8
        $region16: #{tpu_custom_call.1} parent=11 // pred_fallthru
          _
        // Predicated region
        $region17: #{tpu_custom_call.1} parent=11 // pred_check
          %p143 = pneg %p94
        $region18: #{tpu_custom_call.1} parent=11 // pred_check_branch
          %145 = sbr.rel (%p143) target = $region20
        $region19: #{tpu_custom_call.1} parent=11 // pred_region
          _
        $region20: #{tpu_custom_call.1} parent=11 // pred_fallthru
          _
      $region12: #{tpu_custom_call.1} parent=5 // pred_fallthru
        _
      %p146 = scmp.lt.s32.totalorder %s24, 16
      // Predicated region
      $region21: #{tpu_custom_call.1} parent=5 // pred_check
        %p147 = pneg %p146
      $region22: #{tpu_custom_call.1} parent=5 // pred_check_branch
        %149 = sbr.rel (%p147) target = $region24
      $region23: #{tpu_custom_call.1} parent=5 // pred_region
        // Predicated region
        $region25: #{tpu_custom_call.1} parent=23 // pred_check
          %p150 = pneg %p46
        $region26: #{tpu_custom_call.1} parent=23 // pred_check_branch
          %152 = sbr.rel (%p150) target = $region28
        $region27: #{tpu_custom_call.1} parent=23 // pred_region
          %s153 = sand.u32 %s36, 1
          %s154 = scalar_lea.sflag [#allocation7], %s153
          %s155 = sand.u32 %s36, 1
          %s156 = scalar_lea.vmem [#allocation6], %s155
          %s157 = sld [smem:[#allocation4 + %s24]]
          %s159 = ssub.s32 16, 16
          %160 = vsyncadd %s154, %s159
          %s161 = smul.addr %s157, 16
          %s162 = scalar_lea.hbm %s2, %s161
          %s164 = sshll.u32 %s156, 4
          %s165 = int_to_ptr.vmem [resolvable:$true] %s164
          %167 = dma.hbm_to_vmem [thread:$0]  %s162, 16, %s165, %s154
        $region28: #{tpu_custom_call.1} parent=23 // pred_fallthru
          _
      $region24: #{tpu_custom_call.1} parent=5 // pred_fallthru
        _
      %p168 = scmp.le.s32.totalorder 1, %s24
      %p169 = scmp.lt.s32.totalorder %s24, 17
      %p170 = pnand %p168, %p169
      %p171 = pneg %p170
      // Predicated region
      $region29: #{tpu_custom_call.1} parent=5 // pred_check
        _
      $region30: #{tpu_custom_call.1} parent=5 // pred_check_branch
        %173 = sbr.rel (%p170) target = $region32
      $region31: #{tpu_custom_call.1} parent=5 // pred_region
        %s174 = ssub.s32 %s24, 1
        %s175 = sand.u32 %s39, 1
        %s176 = scalar_lea.sflag [#allocation7], %s175
        %s177 = sand.u32 %s39, 1
        %s178 = scalar_lea.vmem [#allocation6], %s177
        // Predicated region
        $region33: #{tpu_custom_call.1} parent=31 // pred_check
          %p179 = pneg %p52
        $region34: #{tpu_custom_call.1} parent=31 // pred_check_branch
          %181 = sbr.rel (%p179) target = $region36
        $region35: #{tpu_custom_call.1} parent=31 // pred_region
          %182 = dma.done %s176, 16
        $region36: #{tpu_custom_call.1} parent=31 // pred_fallthru
          _
        // Predicated region
        $region37: #{tpu_custom_call.1} parent=31 // pred_check
          %p183 = pneg %p73
        $region38: #{tpu_custom_call.1} parent=31 // pred_check_branch
          %185 = sbr.rel (%p183) target = $region40
        $region39: #{tpu_custom_call.1} parent=31 // pred_region
          %186 = dma.done [#allocation10], 2048
        $region40: #{tpu_custom_call.1} parent=31 // pred_fallthru
          _
        %s187 = sand.u32 %s39, 1
        %s188 = scalar_lea.sflag [#allocation7], %s187
        %s189 = sand.u32 %s39, 1
        %s190 = scalar_lea.vmem [#allocation6], %s189
        %p191 = pneg %p52
        %p192 = pneg %p49
        %p193 = pneg %p73
        %p194 = pneg %p70
        %p195 = pneg %p94
        %p196 = pneg %p91
        %p197 = pneg %p115
        %p198 = pneg %p112
        %s199 = sld [smem:[#allocation4 + %s29]]
        %p200 = scmp.eq.s32.totalorder %s29, 0
        // Predicated region
        $region41: #{tpu_custom_call.1} parent=31 // pred_check
          %p201 = pneg %p200
        $region42: #{tpu_custom_call.1} parent=31 // pred_check_branch
          %203 = sbr.rel (%p201) target = $region44
        $region43: #{tpu_custom_call.1} parent=31 // pred_region
          %204 = vst [vmem:[#allocation2] sm:$0xff] 0.0
        $region44: #{tpu_custom_call.1} parent=31 // pred_fallthru
          _
        %s205 = sld [smem:[#allocation5 + %s29]]
        %v206 = vlaneseq
        %v207 = vshrl.u32 %v206, 7
        %v208 = vstv %s205
        %vm209 = vcmp.eq.s32.totalorder %v207, %v208
        %v210 = vsel %vm209, 1, 0
        %v211 = vcvt.s32.f32 %v210
        %v212 = vld [vmem:[#allocation2] sm:$0xff]
        %v213 = vld [vmem:[%s178] sm:$0x1]
        %v215 = vlaneseq
        %v216 = vshrl.u32 %v215, 7
        %v217 = vsub.s32 0, %v216
        %v218 = vrot.slane %v213, %v217
        %v220 = vmul.f32 %v211, %v218
        %v221 = vadd.f32 %v212, %v220
        %222 = vst [vmem:[#allocation2] sm:$0xff] %v221
        %p223 = scmp.eq.s32.totalorder %s29, 15
        // Predicated region
        $region45: #{tpu_custom_call.1} parent=31 // pred_check
          %p224 = pneg %p223
        $region46: #{tpu_custom_call.1} parent=31 // pred_check_branch
          %226 = sbr.rel (%p224) target = $region48
        $region47: #{tpu_custom_call.1} parent=31 // pred_region
          %v227 = vld [vmem:[#allocation2] sm:$0xff]
          %v228 = vmul.f32 %v227, 0.01
          %v229 = vmax.f32 %v227, %v228
          %v230 = vld [vmem:[#allocation9] sm:$0xff]
          %v231 = vld [vmem:[#allocation9 + $0x8] sm:$0xff]
          %v232 = vld [vmem:[#allocation9 + $0x10] sm:$0xff]
          %v233 = vld [vmem:[#allocation9 + $0x18] sm:$0xff]
          %v234 = vld [vmem:[#allocation9 + $0x20] sm:$0xff]
          %v235 = vld [vmem:[#allocation9 + $0x28] sm:$0xff]
          %v236 = vld [vmem:[#allocation9 + $0x30] sm:$0xff]
          %v237 = vld [vmem:[#allocation9 + $0x38] sm:$0xff]
          %v238 = vld [vmem:[#allocation9 + $0x40] sm:$0xff]
          %v239 = vld [vmem:[#allocation9 + $0x48] sm:$0xff]
          %v240 = vld [vmem:[#allocation9 + $0x50] sm:$0xff]
          %v241 = vld [vmem:[#allocation9 + $0x58] sm:$0xff]
          %v242 = vld [vmem:[#allocation9 + $0x60] sm:$0xff]
          %v243 = vld [vmem:[#allocation9 + $0x68] sm:$0xff]
          %v244 = vld [vmem:[#allocation9 + $0x70] sm:$0xff]
          %v245 = vld [vmem:[#allocation9 + $0x78] sm:$0xff]
          %v246 = vld [vmem:[%s4] sm:$0x1]
          %v248 = vlaneseq
          %v249 = vshrl.u32 %v248, 7
          %v250 = vsub.s32 0, %v249
          %v251 = vrot.slane %v246, %v250
          %253 = vmatprep.subr.mxu0 0.0
          %254 = vmatpush1.xpose.msra.mxu0 %v245
          %255 = vmatprep.subr.mxu0 0.0
          %256 = vmatpush1.xpose.msra.mxu0 %v244
          %257 = vmatprep.subr.mxu0 0.0
          %258 = vmatpush1.xpose.msra.mxu0 %v243
          %259 = vmatprep.subr.mxu0 0.0
          %260 = vmatpush1.xpose.msra.mxu0 %v242
          %261 = vmatprep.subr.mxu0 0.0
          %262 = vmatpush1.xpose.msra.mxu0 %v241
          %263 = vmatprep.subr.mxu0 0.0
          %264 = vmatpush1.xpose.msra.mxu0 %v240
          %265 = vmatprep.subr.mxu0 0.0
          %266 = vmatpush1.xpose.msra.mxu0 %v239
          %267 = vmatprep.subr.mxu0 0.0
          %268 = vmatpush1.xpose.msra.mxu0 %v238
          %269 = vmatprep.subr.mxu0 0.0
          %270 = vmatpush1.xpose.msra.mxu0 %v237
          %271 = vmatprep.subr.mxu0 0.0
          %272 = vmatpush1.xpose.msra.mxu0 %v236
          %273 = vmatprep.subr.mxu0 0.0
          %274 = vmatpush1.xpose.msra.mxu0 %v235
          %275 = vmatprep.subr.mxu0 0.0
          %276 = vmatpush1.xpose.msra.mxu0 %v234
          %277 = vmatprep.subr.mxu0 0.0
          %278 = vmatpush1.xpose.msra.mxu0 %v233
          %279 = vmatprep.subr.mxu0 0.0
          %280 = vmatpush1.xpose.msra.mxu0 %v232
          %281 = vmatprep.subr.mxu0 0.0
          %282 = vmatpush1.xpose.msra.mxu0 %v231
          %283 = vmatprep.subr.mxu0 0.0
          %284 = vmatpush1.xpose.msra.mxu0 %v230
          %285 = vmatprep.subr.mxu0 0.0
          %286 = vmatpush2.xpose.msra.mxu0 0.0
          %287 = vmatprep.subr.mxu0 0.0
          %288 = vmatpush2.xpose.msra.mxu0 0.0
          %289 = vmatprep.subr.mxu0 0.0
          %290 = vmatpush2.xpose.msra.mxu0 0.0
          %291 = vmatprep.subr.mxu0 0.0
          %292 = vmatpush2.xpose.msra.mxu0 0.0
          %293 = vmatprep.subr.mxu0 0.0
          %294 = vmatpush2.xpose.msra.mxu0 0.0
          %295 = vmatprep.subr.mxu0 0.0
          %296 = vmatpush2.xpose.msra.mxu0 0.0
          %297 = vmatprep.subr.mxu0 0.0
          %298 = vmatpush2.xpose.msra.mxu0 0.0
          %299 = vmatprep.subr.mxu0 0.0
          %300 = vmatpush2.xpose.msra.mxu0 0.0
          %301 = vmatprep.subr.mxu0 0.0
          %302 = vmatpush2.xpose.msra.mxu0 0.0
          %303 = vmatprep.subr.mxu0 0.0
          %304 = vmatpush2.xpose.msra.mxu0 0.0
          %305 = vmatprep.subr.mxu0 0.0
          %306 = vmatpush2.xpose.msra.mxu0 0.0
          %307 = vmatprep.subr.mxu0 0.0
          %308 = vmatpush2.xpose.msra.mxu0 0.0
          %309 = vmatprep.subr.mxu0 0.0
          %310 = vmatpush2.xpose.msra.mxu0 0.0
          %311 = vmatprep.subr.mxu0 0.0
          %312 = vmatpush2.xpose.msra.mxu0 0.0
          %313 = vmatprep.subr.mxu0 0.0
          %314 = vmatpush2.xpose.msra.mxu0 0.0
          %315 = vmatprep.subr.mxu0 0.0
          %316 = vmatpush2.xpose.msra.mxu0 0.0
          %317 = vmatprep.mubr.f32.mxu0 0.0
          %318 = vmatmul.mubr.f32.gmra.mxu0 %v229
          %v319 = vpop.f32.mrf.mxu0
          %v320 = vadd.f32 %v251, %v319
          %v321 = vpop.f32.mrf.mxu0
          %322 = vdwg.mxu0
          %323 = vst [vmem:[#allocation11] sm:$0xff] %v320
        $region48: #{tpu_custom_call.1} parent=31 // pred_fallthru
          _
        // Predicated region
        $region49: #{tpu_custom_call.1} parent=31 // pred_check
          %p324 = pneg %p112
        $region50: #{tpu_custom_call.1} parent=31 // pred_check_branch
          %326 = sbr.rel (%p324) target = $region52
        $region51: #{tpu_custom_call.1} parent=31 // pred_region
          %s328 = ssub.s32 128, 128
          %329 = vsyncadd [#allocation8], %s328
          %s331 = sshll.u32 [#allocation11], 4
          %s332 = int_to_ptr.vmem [resolvable:$true] %s331
          %334 = dma.vmem_to_hbm [thread:$0]  %s332, 128, %s5, [#allocation8]
        $region52: #{tpu_custom_call.1} parent=31 // pred_fallthru
          _
        // Predicated region
        $region53: #{tpu_custom_call.1} parent=31 // pred_check
          %p335 = pneg %p112
        $region54: #{tpu_custom_call.1} parent=31 // pred_check_branch
          %337 = sbr.rel (%p335) target = $region56
        $region55: #{tpu_custom_call.1} parent=31 // pred_region
          %338 = dma.done [#allocation8], 128
        $region56: #{tpu_custom_call.1} parent=31 // pred_fallthru
          _
      $region32: #{tpu_custom_call.1} parent=5 // pred_fallthru
        _
      %p339 = scmp.le.s32.totalorder 2, %s24
      // Predicated region
      $region57: #{tpu_custom_call.1} parent=5 // pred_check
        %p340 = pneg %p339
      $region58: #{tpu_custom_call.1} parent=5 // pred_check_branch
        %342 = sbr.rel (%p340) target = $region60
      $region59: #{tpu_custom_call.1} parent=5 // pred_region
        %s343 = ssub.s32 %s24, 2
      $region60: #{tpu_custom_call.1} parent=5 // pred_fallthru
        _
    $region6: #{tpu_custom_call.1} parent=1 // loop_footer
      %s28 = sadd.s32 1, %s24
    $region7: #{tpu_custom_call.1} parent=1 // loop_footer_branch
      %23 = sbr.rel target = $region3
    $region8: #{tpu_custom_call.1} parent=1 // loop_exit
      _
    %344 = vsyncpa [#allocation7], 1
    %s345 = scalar_lea.sflag [#allocation7], 1
    %346 = vsyncpa %s345, 1
    %347 = vsyncpa [#allocation10], 1
    %348 = vsyncpa [#allocation8], 1
    %s349 = scalar_lea.sflag [#allocation8], 1
    %350 = vsyncpa %s349, 1

</llo_original>
